<compile_context>
chip_gen: v7x
topology: tpu7x:2x2x1
jax: 0.10.0
libtpu: 0.0.40
codegen_flags: <defaults>
</compile_context>

<pallas_src>
import functools

import jax
import jax.numpy as jnp
from jax.experimental import pallas as pl
from jax.experimental.pallas import tpu as pltpu

_INV_SQRT2 = 0.7071067811865476


def _gelu_exact(x):
    # Exact (erf-based) GELU, matching HF ACT2FN['gelu'].
    return 0.5 * x * (1.0 + jax.lax.erf(x * _INV_SQRT2))


def _lm_head_kernel(x_ref, w1_ref, b1_ref, gamma_ref, beta_ref,
                    w2_ref, b2_ref, o_ref, act_ref, *, eps):
    # x_ref:[TM,H] (native dtype)  w1:[H,H] (compute dtype)
    # b1/gamma/beta:[1,H] f32      w2:[H,TV] (compute dtype)  b2:[1,TV] f32
    # o_ref:[TM,TV]                act_ref (VMEM scratch):[TM,H] compute dtype
    #
    # act_ref carries the dense+GELU+LN activation across the vocab grid axis;
    # correctness requires the vocab axis to be innermost and sequential
    # ("arbitrary"). Do NOT mark it "parallel".
    @pl.when(pl.program_id(1) == 0)
    def _():
        xb = x_ref[...].astype(w1_ref.dtype)           # bf16 MXU operands
        h = jnp.dot(xb, w1_ref[...], preferred_element_type=jnp.float32)
        h = _gelu_exact(h + b1_ref[...])                # f32 bias + GELU
        # LayerNorm over the hidden dim, statistics in f32.
        mu = jnp.mean(h, axis=-1, keepdims=True)
        c = h - mu
        var = jnp.mean(c * c, axis=-1, keepdims=True)
        act = (c * jax.lax.rsqrt(var + eps)) * gamma_ref[...] + beta_ref[...]
        act_ref[...] = act.astype(act_ref.dtype)        # bf16 for decoder MXU

    # Decoder projection against the streamed vocab tile of W_dec (f32 accum).
    o_ref[...] = (
        jnp.dot(act_ref[...], w2_ref[...], preferred_element_type=jnp.float32)
        + b2_ref[...]
    ).astype(o_ref.dtype)


def perfformer_lm_head(features, w_dense, b_dense, ln_gamma, ln_beta,
                       w_dec, b_dec, *, eps=1e-5, tm=None, tv=None,
                       compute_dtype=jnp.bfloat16, out_dtype=jnp.float32):
    """features: [B, S, H]. Returns logits [B, S, V] in out_dtype (f32 default)."""
    B, S, H = features.shape
    V = w_dec.shape[1]
    T = B * S

    # Token-tile size: large tiles amortize the per-token-tile W_dec restream
    # (weight traffic scales ~ H/tm); must be a multiple of 8 sublanes unless
    # it covers the whole (padded) token axis.
    if tm is None:
        if T <= 1024:
            tm = max(8, pl.cdiv(T, 8) * 8)
        else:
            tm = next((c for c in (1024, 512, 256) if T % c == 0), 1024)

    # Vocab-tile size: multiple of 128 lanes (lane-dense stores), preferring a
    # value that divides V so no wrapper-side pad of W_dec is needed. 512 keeps
    # the VMEM budget friendly on v5e while staying a multiple of 256 for the
    # v6e/v7x MXU.
    if tv is None:
        if V < 128:
            tv = V
        elif V <= 1024 and V % 128 == 0:
            tv = V
        else:
            tv = next((c for c in (512, 256, 128) if V % c == 0), 512)

    t_pad = pl.cdiv(T, tm) * tm
    v_pad = pl.cdiv(V, tv) * tv

    # Stream features in their native dtype (no wrapper-side f32 upcast).
    x = features.reshape(T, H)
    if t_pad != T:
        x = jnp.pad(x, ((0, t_pad - T), (0, 0)))

    # Weights in bf16 (MXU fast path, half the HBM/DMA/VMEM); biases and LN
    # affine params stay f32 (negligible traffic, better accuracy).
    w1 = w_dense.astype(compute_dtype)
    b1 = b_dense.reshape(1, H).astype(jnp.float32)
    g = ln_gamma.reshape(1, H).astype(jnp.float32)
    bt = ln_beta.reshape(1, H).astype(jnp.float32)
    w2 = w_dec.astype(compute_dtype)
    b2 = b_dec.reshape(1, V).astype(jnp.float32)
    if v_pad != V:
        # TODO(synk): handle the ragged last vocab tile in-kernel to avoid this
        # full extra HBM copy of W_dec for vocab sizes not divisible by 128.
        w2 = jnp.pad(w2, ((0, 0), (0, v_pad - V)))
        b2 = jnp.pad(b2, ((0, 0), (0, v_pad - V)))

    grid = (t_pad // tm, v_pad // tv)
    const = lambda i, j: (0, 0)

    # Explicit VMEM budget: residents + double-buffered streamed tiles + act
    # scratch, with headroom. Clamped to a sane range.
    cds = jnp.dtype(compute_dtype).itemsize
    xis = jnp.dtype(x.dtype).itemsize
    ois = jnp.dtype(out_dtype).itemsize
    need = (
        2 * (H * H * cds + 3 * H * 4)        # resident W_dense + b/gamma/beta
        + 2 * tm * H * xis                   # streamed feature tile
        + 2 * (H * tv * cds + tv * 4)        # streamed W_dec / b_dec vocab tile
        + 2 * tm * tv * ois                  # output tile
        + tm * H * cds                       # activation scratch
    )
    vmem_limit = max(32 << 20, min(int(need * 1.25) + (2 << 20), 128 << 20))

    kernel = functools.partial(_lm_head_kernel, eps=float(eps))
    out = pl.pallas_call(
        kernel,
        out_shape=jax.ShapeDtypeStruct((t_pad, v_pad), out_dtype),
        grid_spec=pltpu.PrefetchScalarGridSpec(
            num_scalar_prefetch=0,
            grid=grid,
            in_specs=[
                pl.BlockSpec((tm, H), lambda i, j: (i, 0)),   # streamed token tile
                pl.BlockSpec((H, H), const),                  # dense W (resident)
                pl.BlockSpec((1, H), const),                  # dense b (resident)
                pl.BlockSpec((1, H), const),                  # LN gamma (resident)
                pl.BlockSpec((1, H), const),                  # LN beta (resident)
                pl.BlockSpec((H, tv), lambda i, j: (0, j)),   # decoder W vocab tile
                pl.BlockSpec((1, tv), lambda i, j: (0, j)),   # decoder b vocab tile
            ],
            out_specs=pl.BlockSpec((tm, tv), lambda i, j: (i, j)),
            scratch_shapes=[pltpu.VMEM((tm, H), compute_dtype)],
        ),
        compiler_params=pltpu.CompilerParams(
            # Token axis shards across TensorCores (v7x megacore); vocab axis
            # must remain sequential because act scratch carries across it.
            dimension_semantics=("parallel", "arbitrary"),
            vmem_limit_bytes=vmem_limit,
        ),
    )(x, w1, b1, g, bt, w2, b2)

    return out[:T, :V].reshape(B, S, V)


def _reference(features, w_dense, b_dense, ln_gamma, ln_beta, w_dec, b_dec, eps):
    # Exact f32 reference matching the PyTorch module semantics.
    x = jnp.einsum("bsh,hk->bsk", features, w_dense,
                   precision=jax.lax.Precision.HIGHEST) + b_dense
    x = _gelu_exact(x)
    mu = jnp.mean(x, axis=-1, keepdims=True)
    var = jnp.mean((x - mu) ** 2, axis=-1, keepdims=True)
    x = (x - mu) / jnp.sqrt(var + eps) * ln_gamma + ln_beta
    return jnp.einsum("bsh,hv->bsv", x, w_dec,
                      precision=jax.lax.Precision.HIGHEST) + b_dec


if __name__ == "__main__":
    # Small shapes consistent with the module: B=2, S=8, hidden=32, vocab=256.
    B, S, H, V = 2, 8, 32, 256
    eps = 1e-5

    key = jax.random.PRNGKey(0)
    k = jax.random.split(key, 7)
    features = jax.random.normal(k[0], (B, S, H), dtype=jnp.float32)
    w_dense  = jax.random.normal(k[1], (H, H), dtype=jnp.float32) * 0.05
    b_dense  = jax.random.normal(k[2], (H,), dtype=jnp.float32) * 0.05
    ln_gamma = 1.0 + 0.05 * jax.random.normal(k[3], (H,), dtype=jnp.float32)
    ln_beta  = 0.05 * jax.random.normal(k[4], (H,), dtype=jnp.float32)
    w_dec    = jax.random.normal(k[5], (H, V), dtype=jnp.float32) * 0.05
    b_dec    = jax.random.normal(k[6], (V,), dtype=jnp.float32) * 0.05

    # tm=8, tv=128 so the tiny demo exercises a real (2, 2) grid.
    out = perfformer_lm_head(features, w_dense, b_dense, ln_gamma, ln_beta,
                             w_dec, b_dec, eps=eps, tm=8, tv=128)
    out = jax.block_until_ready(out)
    ref = _reference(features, w_dense, b_dense, ln_gamma, ln_beta,
                     w_dec, b_dec, eps)

    # Tolerance reflects bf16 MXU operands with f32 accumulation (mixed
    # precision), vs. the fully-f32 HIGHEST-precision reference.
    ok = (out.shape == (B, S, V)
          and bool(jnp.isfinite(out).all())
          and bool(jnp.allclose(out, ref, atol=5e-2, rtol=5e-2)))
    print("KERNEL_OK" if ok else "KERNEL_MISMATCH")
</pallas_src>

<mosaic_0001>
module attributes {stable_mosaic.version = 11 : i64} {
  func.func @_lm_head_kernel(%arg0: i32, %arg1: i32, %arg2: memref<8x32xf32, #tpu.memory_space<vmem>>, %arg3: memref<32x32xbf16, #tpu.memory_space<vmem>>, %arg4: memref<1x32xf32, #tpu.memory_space<vmem>>, %arg5: memref<1x32xf32, #tpu.memory_space<vmem>>, %arg6: memref<1x32xf32, #tpu.memory_space<vmem>>, %arg7: memref<32x128xbf16, #tpu.memory_space<vmem>>, %arg8: memref<1x128xf32, #tpu.memory_space<vmem>>, %arg9: memref<8x128xf32, #tpu.memory_space<vmem>>, %arg10: memref<8x32xbf16, #tpu.memory_space<vmem>>) attributes {dimension_semantics = [#tpu.dimension_semantics<parallel>, #tpu.dimension_semantics<arbitrary>], iteration_bounds = array<i64: 2, 2>, scalar_prefetch = 0 : i64, scratch_operands = 1 : i64, tpu.core_type = #tpu.core_type<tc>, window_params = [{transform_indices = @transform_0, window_bounds = array<i64: 8, 32>}, {pipeline_mode = #tpu.pipeline_mode<synchronous>, transform_indices = @transform_1, window_bounds = array<i64: 32, 32>}, {pipeline_mode = #tpu.pipeline_mode<synchronous>, transform_indices = @transform_2, window_bounds = array<i64: 1, 32>}, {pipeline_mode = #tpu.pipeline_mode<synchronous>, transform_indices = @transform_3, window_bounds = array<i64: 1, 32>}, {pipeline_mode = #tpu.pipeline_mode<synchronous>, transform_indices = @transform_4, window_bounds = array<i64: 1, 32>}, {transform_indices = @transform_5, window_bounds = array<i64: 32, 128>}, {transform_indices = @transform_6, window_bounds = array<i64: 1, 128>}, {transform_indices = @transform_7, window_bounds = array<i64: 8, 128>}]} {
    %c0_i32 = arith.constant 0 : i32
    %0 = arith.cmpi eq, %arg1, %c0_i32 : i32
    %1 = arith.extui %0 : i1 to i32
    %c0_i32_0 = arith.constant 0 : i32
    %2 = arith.cmpi ne, %1, %c0_i32_0 : i32
    scf.if %2 {
      %c0_8 = arith.constant 0 : index
      %c0_9 = arith.constant 0 : index
      %10 = vector.load %arg2[%c0_8, %c0_9] : memref<8x32xf32, #tpu.memory_space<vmem>>, vector<8x32xf32>
      %11 = arith.truncf %10 : vector<8x32xf32> to vector<8x32xbf16>
      %c0_10 = arith.constant 0 : index
      %c0_11 = arith.constant 0 : index
      %12 = vector.load %arg3[%c0_10, %c0_11] : memref<32x32xbf16, #tpu.memory_space<vmem>>, vector<32x32xbf16>
      %cst_12 = arith.constant dense<0.000000e+00> : vector<8x32xf32>
      %13 = tpu.matmul %11, %12, %cst_12 {dimension_numbers = #tpu.dot_dimension_numbers<[1], [0], [0], [1], [0, 0, 1, 1], [], []>} : vector<8x32xbf16>, vector<32x32xbf16>, vector<8x32xf32> -> vector<8x32xf32>
      %c0_13 = arith.constant 0 : index
      %c0_14 = arith.constant 0 : index
      %14 = vector.load %arg4[%c0_13, %c0_14] : memref<1x32xf32, #tpu.memory_space<vmem>>, vector<1x32xf32>
      %15 = vector.broadcast %14 : vector<1x32xf32> to vector<8x32xf32>
      %16 = arith.addf %13, %15 : vector<8x32xf32>
      %cst_15 = arith.constant 5.000000e-01 : f32
      %17 = vector.broadcast %cst_15 : f32 to vector<8x32xf32>
      %18 = arith.mulf %17, %16 : vector<8x32xf32>
      %cst_16 = arith.constant 0.707106769 : f32
      %19 = vector.broadcast %cst_16 : f32 to vector<8x32xf32>
      %20 = arith.mulf %16, %19 : vector<8x32xf32>
      %21 = math.erf %20 : vector<8x32xf32>
      %cst_17 = arith.constant 1.000000e+00 : f32
      %22 = vector.broadcast %cst_17 : f32 to vector<8x32xf32>
      %23 = arith.addf %22, %21 : vector<8x32xf32>
      %24 = arith.mulf %18, %23 : vector<8x32xf32>
      %cst_18 = arith.constant dense<0.000000e+00> : vector<8xf32>
      %25 = vector.multi_reduction <add>, %24, %cst_18 [1] : vector<8x32xf32> to vector<8xf32>
      %26 = vector.shape_cast %25 : vector<8xf32> to vector<8x1xf32>
      %cst_19 = arith.constant 3.200000e+01 : f32
      %27 = vector.broadcast %cst_19 : f32 to vector<8x1xf32>
      %28 = arith.divf %26, %27 : vector<8x1xf32>
      %29 = vector.broadcast %28 : vector<8x1xf32> to vector<8x32xf32>
      %30 = arith.subf %24, %29 : vector<8x32xf32>
      %31 = arith.mulf %30, %30 : vector<8x32xf32>
      %cst_20 = arith.constant dense<0.000000e+00> : vector<8xf32>
      %32 = vector.multi_reduction <add>, %31, %cst_20 [1] : vector<8x32xf32> to vector<8xf32>
      %33 = vector.shape_cast %32 : vector<8xf32> to vector<8x1xf32>
      %cst_21 = arith.constant 3.200000e+01 : f32
      %34 = vector.broadcast %cst_21 : f32 to vector<8x1xf32>
      %35 = arith.divf %33, %34 : vector<8x1xf32>
      %cst_22 = arith.constant 9.99999974E-6 : f32
      %36 = vector.broadcast %cst_22 : f32 to vector<8x1xf32>
      %37 = arith.addf %35, %36 : vector<8x1xf32>
      %38 = math.rsqrt %37 : vector<8x1xf32>
      %39 = vector.broadcast %38 : vector<8x1xf32> to vector<8x32xf32>
      %40 = arith.mulf %30, %39 : vector<8x32xf32>
      %c0_23 = arith.constant 0 : index
      %c0_24 = arith.constant 0 : index
      %41 = vector.load %arg5[%c0_23, %c0_24] : memref<1x32xf32, #tpu.memory_space<vmem>>, vector<1x32xf32>
      %42 = vector.broadcast %41 : vector<1x32xf32> to vector<8x32xf32>
      %43 = arith.mulf %40, %42 : vector<8x32xf32>
      %c0_25 = arith.constant 0 : index
      %c0_26 = arith.constant 0 : index
      %44 = vector.load %arg6[%c0_25, %c0_26] : memref<1x32xf32, #tpu.memory_space<vmem>>, vector<1x32xf32>
      %45 = vector.broadcast %44 : vector<1x32xf32> to vector<8x32xf32>
      %46 = arith.addf %43, %45 : vector<8x32xf32>
      %47 = arith.truncf %46 : vector<8x32xf32> to vector<8x32xbf16>
      %c0_27 = arith.constant 0 : index
      %c0_28 = arith.constant 0 : index
      %48 = vector.load %arg10[%c0_27, %c0_28] : memref<8x32xbf16, #tpu.memory_space<vmem>>, vector<8x32xbf16>
      tpu.vector_store %arg10[%c0_27, %c0_28], %47 {strides = array<i32>} : memref<8x32xbf16, #tpu.memory_space<vmem>>, vector<8x32xbf16>,
    } else {
    }
    %c0 = arith.constant 0 : index
    %c0_1 = arith.constant 0 : index
    %3 = vector.load %arg10[%c0, %c0_1] : memref<8x32xbf16, #tpu.memory_space<vmem>>, vector<8x32xbf16>
    %c0_2 = arith.constant 0 : index
    %c0_3 = arith.constant 0 : index
    %4 = vector.load %arg7[%c0_2, %c0_3] : memref<32x128xbf16, #tpu.memory_space<vmem>>, vector<32x128xbf16>
    %cst = arith.constant dense<0.000000e+00> : vector<8x128xf32>
    %5 = tpu.matmul %3, %4, %cst {dimension_numbers = #tpu.dot_dimension_numbers<[1], [0], [0], [1], [0, 0, 1, 1], [], []>} : vector<8x32xbf16>, vector<32x128xbf16>, vector<8x128xf32> -> vector<8x128xf32>
    %c0_4 = arith.constant 0 : index
    %c0_5 = arith.constant 0 : index
    %6 = vector.load %arg8[%c0_4, %c0_5] : memref<1x128xf32, #tpu.memory_space<vmem>>, vector<1x128xf32>
    %7 = vector.broadcast %6 : vector<1x128xf32> to vector<8x128xf32>
    %8 = arith.addf %5, %7 : vector<8x128xf32>
    %c0_6 = arith.constant 0 : index
    %c0_7 = arith.constant 0 : index
    %9 = vector.load %arg9[%c0_6, %c0_7] : memref<8x128xf32, #tpu.memory_space<vmem>>, vector<8x128xf32>
    tpu.vector_store %arg9[%c0_6, %c0_7], %8 {strides = array<i32>} : memref<8x128xf32, #tpu.memory_space<vmem>>, vector<8x128xf32>,
    return
  }
  func.func @transform_0(%arg0: i32, %arg1: i32) -> (i32, i32) {
    %c0_i32 = arith.constant 0 : i32
    %c0_i32_0 = arith.constant 0 : i32
    return %arg0, %c0_i32 : i32, i32
  }
  func.func @transform_1(%arg0: i32, %arg1: i32) -> (i32, i32) {
    %c0_i32 = arith.constant 0 : i32
    %c0_i32_0 = arith.constant 0 : i32
    %c0_i32_1 = arith.constant 0 : i32
    return %c0_i32, %c0_i32_0 : i32, i32
  }
  func.func @transform_2(%arg0: i32, %arg1: i32) -> (i32, i32) {
    %c0_i32 = arith.constant 0 : i32
    %c0_i32_0 = arith.constant 0 : i32
    %c0_i32_1 = arith.constant 0 : i32
    return %c0_i32, %c0_i32_0 : i32, i32
  }
  func.func @transform_3(%arg0: i32, %arg1: i32) -> (i32, i32) {
    %c0_i32 = arith.constant 0 : i32
    %c0_i32_0 = arith.constant 0 : i32
    %c0_i32_1 = arith.constant 0 : i32
    return %c0_i32, %c0_i32_0 : i32, i32
  }
  func.func @transform_4(%arg0: i32, %arg1: i32) -> (i32, i32) {
    %c0_i32 = arith.constant 0 : i32
    %c0_i32_0 = arith.constant 0 : i32
    %c0_i32_1 = arith.constant 0 : i32
    return %c0_i32, %c0_i32_0 : i32, i32
  }
  func.func @transform_5(%arg0: i32, %arg1: i32) -> (i32, i32) {
    %c0_i32 = arith.constant 0 : i32
    %c0_i32_0 = arith.constant 0 : i32
    return %c0_i32, %arg1 : i32, i32
  }
  func.func @transform_6(%arg0: i32, %arg1: i32) -> (i32, i32) {
    %c0_i32 = arith.constant 0 : i32
    %c0_i32_0 = arith.constant 0 : i32
    return %c0_i32, %arg1 : i32, i32
  }
  func.func @transform_7(%arg0: i32, %arg1: i32) -> (i32, i32) {
    %c0_i32 = arith.constant 0 : i32
    return %arg0, %arg1 : i32, i32
  }
}

</mosaic_0001>

<llo_original>
// kernel: tpu_custom_call.1
$region0: #{tpu_custom_call.1}
  #allocation0 [shape = 'u32[]', space=smem, size = 0x4, offset = 0x4, fixed_abs, tag = 'smem constant byte address 0x4 - core index']
  #allocation1 [shape = 'u32[144,128]{1,0:T(1,128)}', space=vmem, size = 0x12000, scoped, tag = 'internal scratch']
  #allocation2 [shape = 'bf16[8,32]{1,0:T(8,128)(2,1)}', space=vmem, size = 0x800, scoped, tag = 'scratch operand']
  %s0 = inlined_call_operand.hbm [shape: f32[16,32], index: 0, kind: input, shape index: {}]
  %s1 = inlined_call_operand.hbm [shape: bf16[32,32], index: 1, kind: input, shape index: {}]
  %s2 = inlined_call_operand.vmem [shape: f32[1,32], index: 2, kind: input, shape index: {}]
  %s3 = inlined_call_operand.vmem [shape: f32[1,32], index: 3, kind: input, shape index: {}]
  %s4 = inlined_call_operand.vmem [shape: f32[1,32], index: 4, kind: input, shape index: {}]
  %s5 = inlined_call_operand.hbm [shape: bf16[32,256], index: 5, kind: input, shape index: {}]
  %s6 = inlined_call_operand.vmem [shape: f32[1,256], index: 6, kind: input, shape index: {}]
  %s7 = inlined_call_operand.hbm [shape: f32[16,256], index: 7, kind: output, shape index: {}]
  %s8 = sld [smem:[#allocation0]]
  $region77: #{tpu_custom_call.1} parent=0
    _
  %s10 = ssub.s32 1, %s8
  %s11 = scalar_select 0, %s10, %s8
  $region1: #{tpu_custom_call.1} parent=0
    #allocation3 [shape = 'u8[8192]{0}', space=vmem, size = 0x2000, scoped, tag = 'input window, operand 0']
    #allocation4 [shape = 's32[2]{0}', space=sflag, size = 0x8, scoped, tag = 'scoped memory for tpu_custom_call.1']
    #allocation5 [shape = 's32[2]{0}', space=sflag, size = 0x8, scoped, tag = 'scoped memory for tpu_custom_call.1']
    #allocation6 [shape = 'u8[8192]{0}', space=vmem, size = 0x2000, scoped, tag = 'input window, operand 1, single buffered']
    #allocation7 [shape = 's32[1]{0}', space=sflag, size = 0x4, scoped, tag = 'scoped memory for tpu_custom_call.1']
    #allocation8 [shape = 'u8[16384]{0}', space=vmem, size = 0x4000, scoped, tag = 'input window, operand 5']
    #allocation9 [shape = 'u8[8192]{0}', space=vmem, size = 0x2000, scoped, tag = 'output window, operand 0']
    %12 = vsyncpa [#allocation4], 0
    %s13 = scalar_lea.sflag [#allocation4], 1
    %14 = vsyncpa %s13, 0
    %15 = vsyncpa [#allocation7], 0
    %16 = vsyncpa [#allocation5], 0
    %s17 = scalar_lea.sflag [#allocation5], 1
    %18 = vsyncpa %s17, 0
    loop: start=0, step=1, limit=6
    $region2: #{tpu_custom_call.1} parent=1 // loop_pre_header
      _
    $region3: #{tpu_custom_call.1} parent=1 // loop_header
      %s20 = sphi 0, %s24
      %p21 = scmp.ge.s32.totalorder %s20, 6
      %s27 = sphi 0, %s39
      %s28 = sphi 0, %s35
      %s29 = sphi 0, %s27
      %s30 = sphi 0, %s28
      %s31 = sphi 0, %s29
      %s32 = sphi 0, %s30
      %s42 = sphi 0, %s44
      %s45 = sphi 0, %s42
      %s46 = sphi 0, %s45
      %s62 = sphi 0, %s46
      %s66 = sphi 0, %s66
      %s68 = sphi 0, %s66
      %s69 = sphi 0, %s68
      %s83 = sphi 0, %s69
      %s87 = sphi 0, %s87
      %s89 = sphi 0, %s87
      %s90 = sphi 0, %s89
      %s104 = sphi 0, %s90
      %s108 = sphi 0, %s108
      %s110 = sphi 0, %s108
      %s111 = sphi 0, %s110
      %s125 = sphi 0, %s111
      %s129 = sphi 0, %s129
      %s131 = sphi 0, %s129
      %s132 = sphi 0, %s131
      %s146 = sphi 0, %s132
      %s152 = sphi 0, %s154
      %s155 = sphi 0, %s152
      %s156 = sphi 0, %s155
      %s172 = sphi 0, %s156
      %s178 = sphi 0, %s180
      %s181 = sphi 0, %s178
      %s182 = sphi 0, %s181
      %s198 = sphi 0, %s182
      %s206 = sphi 0, %s208
      %s209 = sphi 0, %s206
      %s210 = sphi 0, %s209
      %s226 = sphi 0, %s210
    $region4: #{tpu_custom_call.1} parent=1 // loop_header_branch
      %23 = sbr.rel (%p21) target = $region8
    $region5: #{tpu_custom_call.1} parent=1 // loop_body
      %s25 = ssub.s32 %s20, 1
      %s26 = ssub.s32 %s20, 2
      %s33 = sadd.s32 1, %s28
      %p34 = scmp.ge.s32.totalorder %s33, 2
      %s35 = scalar_select %p34, 0, %s33
      %s36 = sadd.s32 1, %s27
      %s37 = scalar_select %p34, %s36, %s27
      %p38 = scmp.ge.s32.totalorder %s37, 2
      %s39 = scalar_select %p38, 0, %s37
      %s40 = ssub.s32 %s27, %s39
      %p41 = scmp.eq.s32.totalorder %s40, 0
      %s43 = sadd.s32 %s42, 1
      %s44 = scalar_select %p41, %s42, %s43
      %p47 = pneg %p41
      %p48 = scmp.eq.s32.totalorder %s20, 3
      %p49 = por %p47, %p48
      %p50 = scmp.ne.s32.totalorder %s42, %s45
      %p51 = scmp.eq.s32.totalorder %s20, 0
      %p52 = por %p50, %p51
      %p53 = scmp.ne.s32.totalorder %s42, %s45
      %p54 = scmp.eq.s32.totalorder %s25, 3
      %p55 = por %p53, %p54
      %p56 = scmp.ne.s32.totalorder %s45, %s46
      %p57 = scmp.eq.s32.totalorder %s25, 0
      %p58 = por %p56, %p57
      %p59 = scmp.ne.s32.totalorder %s45, %s46
      %p60 = scmp.eq.s32.totalorder %s26, 3
      %p61 = por %p59, %p60
      %p63 = scmp.ne.s32.totalorder %s46, %s62
      %p64 = scmp.eq.s32.totalorder %s26, 0
      %p65 = por %p63, %p64
      %s67 = sadd.s32 %s66, 1
      %p70 = scmp.eq.s32.totalorder %s20, 3
      %p71 = scmp.ne.s32.totalorder %s66, %s68
      %p72 = scmp.eq.s32.totalorder %s20, 0
      %p73 = por %p71, %p72
      %p74 = scmp.ne.s32.totalorder %s66, %s68
      %p75 = scmp.eq.s32.totalorder %s25, 3
      %p76 = por %p74, %p75
      %p77 = scmp.ne.s32.totalorder %s68, %s69
      %p78 = scmp.eq.s32.totalorder %s25, 0
      %p79 = por %p77, %p78
      %p80 = scmp.ne.s32.totalorder %s68, %s69
      %p81 = scmp.eq.s32.totalorder %s26, 3
      %p82 = por %p80, %p81
      %p84 = scmp.ne.s32.totalorder %s69, %s83
      %p85 = scmp.eq.s32.totalorder %s26, 0
      %p86 = por %p84, %p85
      %s88 = sadd.s32 %s87, 1
      %p91 = scmp.eq.s32.totalorder %s20, 3
      %p92 = scmp.ne.s32.totalorder %s87, %s89
      %p93 = scmp.eq.s32.totalorder %s20, 0
      %p94 = por %p92, %p93
      %p95 = scmp.ne.s32.totalorder %s87, %s89
      %p96 = scmp.eq.s32.totalorder %s25, 3
      %p97 = por %p95, %p96
      %p98 = scmp.ne.s32.totalorder %s89, %s90
      %p99 = scmp.eq.s32.totalorder %s25, 0
      %p100 = por %p98, %p99
      %p101 = scmp.ne.s32.totalorder %s89, %s90
      %p102 = scmp.eq.s32.totalorder %s26, 3
      %p103 = por %p101, %p102
      %p105 = scmp.ne.s32.totalorder %s90, %s104
      %p106 = scmp.eq.s32.totalorder %s26, 0
      %p107 = por %p105, %p106
      %s109 = sadd.s32 %s108, 1
      %p112 = scmp.eq.s32.totalorder %s20, 3
      %p113 = scmp.ne.s32.totalorder %s108, %s110
      %p114 = scmp.eq.s32.totalorder %s20, 0
      %p115 = por %p113, %p114
      %p116 = scmp.ne.s32.totalorder %s108, %s110
      %p117 = scmp.eq.s32.totalorder %s25, 3
      %p118 = por %p116, %p117
      %p119 = scmp.ne.s32.totalorder %s110, %s111
      %p120 = scmp.eq.s32.totalorder %s25, 0
      %p121 = por %p119, %p120
      %p122 = scmp.ne.s32.totalorder %s110, %s111
      %p123 = scmp.eq.s32.totalorder %s26, 3
      %p124 = por %p122, %p123
      %p126 = scmp.ne.s32.totalorder %s111, %s125
      %p127 = scmp.eq.s32.totalorder %s26, 0
      %p128 = por %p126, %p127
      %s130 = sadd.s32 %s129, 1
      %p133 = scmp.eq.s32.totalorder %s20, 3
      %p134 = scmp.ne.s32.totalorder %s129, %s131
      %p135 = scmp.eq.s32.totalorder %s20, 0
      %p136 = por %p134, %p135
      %p137 = scmp.ne.s32.totalorder %s129, %s131
      %p138 = scmp.eq.s32.totalorder %s25, 3
      %p139 = por %p137, %p138
      %p140 = scmp.ne.s32.totalorder %s131, %s132
      %p141 = scmp.eq.s32.totalorder %s25, 0
      %p142 = por %p140, %p141
      %p143 = scmp.ne.s32.totalorder %s131, %s132
      %p144 = scmp.eq.s32.totalorder %s26, 3
      %p145 = por %p143, %p144
      %p147 = scmp.ne.s32.totalorder %s132, %s146
      %p148 = scmp.eq.s32.totalorder %s26, 0
      %p149 = por %p147, %p148
      %s150 = ssub.s32 %s28, %s35
      %p151 = scmp.eq.s32.totalorder %s150, 0
      %s153 = sadd.s32 %s152, 1
      %s154 = scalar_select %p151, %s152, %s153
      %p157 = pneg %p151
      %p158 = scmp.eq.s32.totalorder %s20, 3
      %p159 = por %p157, %p158
      %p160 = scmp.ne.s32.totalorder %s152, %s155
      %p161 = scmp.eq.s32.totalorder %s20, 0
      %p162 = por %p160, %p161
      %p163 = scmp.ne.s32.totalorder %s152, %s155
      %p164 = scmp.eq.s32.totalorder %s25, 3
      %p165 = por %p163, %p164
      %p166 = scmp.ne.s32.totalorder %s155, %s156
      %p167 = scmp.eq.s32.totalorder %s25, 0
      %p168 = por %p166, %p167
      %p169 = scmp.ne.s32.totalorder %s155, %s156
      %p170 = scmp.eq.s32.totalorder %s26, 3
      %p171 = por %p169, %p170
      %p173 = scmp.ne.s32.totalorder %s156, %s172
      %p174 = scmp.eq.s32.totalorder %s26, 0
      %p175 = por %p173, %p174
      %s176 = ssub.s32 %s28, %s35
      %p177 = scmp.eq.s32.totalorder %s176, 0
      %s179 = sadd.s32 %s178, 1
      %s180 = scalar_select %p177, %s178, %s179
      %p183 = pneg %p177
      %p184 = scmp.eq.s32.totalorder %s20, 3
      %p185 = por %p183, %p184
      %p186 = scmp.ne.s32.totalorder %s178, %s181
      %p187 = scmp.eq.s32.totalorder %s20, 0
      %p188 = por %p186, %p187
      %p189 = scmp.ne.s32.totalorder %s178, %s181
      %p190 = scmp.eq.s32.totalorder %s25, 3
      %p191 = por %p189, %p190
      %p192 = scmp.ne.s32.totalorder %s181, %s182
      %p193 = scmp.eq.s32.totalorder %s25, 0
      %p194 = por %p192, %p193
      %p195 = scmp.ne.s32.totalorder %s181, %s182
      %p196 = scmp.eq.s32.totalorder %s26, 3
      %p197 = por %p195, %p196
      %p199 = scmp.ne.s32.totalorder %s182, %s198
      %p200 = scmp.eq.s32.totalorder %s26, 0
      %p201 = por %p199, %p200
      %s202 = ssub.s32 %s27, %s39
      %s203 = ssub.s32 %s28, %s35
      %s204 = sor.u32 %s202, %s203
      %p205 = scmp.eq.s32.totalorder %s204, 0
      %s207 = sadd.s32 %s206, 1
      %s208 = scalar_select %p205, %s206, %s207
      %p211 = pneg %p205
      %p212 = scmp.eq.s32.totalorder %s20, 3
      %p213 = por %p211, %p212
      %p214 = scmp.ne.s32.totalorder %s206, %s209
      %p215 = scmp.eq.s32.totalorder %s20, 0
      %p216 = por %p214, %p215
      %p217 = scmp.ne.s32.totalorder %s206, %s209
      %p218 = scmp.eq.s32.totalorder %s25, 3
      %p219 = por %p217, %p218
      %p220 = scmp.ne.s32.totalorder %s209, %s210
      %p221 = scmp.eq.s32.totalorder %s25, 0
      %p222 = por %p220, %p221
      %p223 = scmp.ne.s32.totalorder %s209, %s210
      %p224 = scmp.eq.s32.totalorder %s26, 3
      %p225 = por %p223, %p224
      %p227 = scmp.ne.s32.totalorder %s210, %s226
      %p228 = scmp.eq.s32.totalorder %s26, 0
      %p229 = por %p227, %p228
      %p230 = scmp.le.s32.totalorder 1, %s20
      %p231 = scmp.lt.s32.totalorder %s20, 5
      %p232 = pnand %p230, %p231
      %p233 = pneg %p232
      // Predicated region
      $region9: #{tpu_custom_call.1} parent=5 // pred_check
        _
      $region10: #{tpu_custom_call.1} parent=5 // pred_check_branch
        %235 = sbr.rel (%p232) target = $region12
      $region11: #{tpu_custom_call.1} parent=5 // pred_region
        %s236 = ssub.s32 %s20, 1
        // Predicated region
        $region13: #{tpu_custom_call.1} parent=11 // pred_check
          %p237 = pneg %p79
        $region14: #{tpu_custom_call.1} parent=11 // pred_check_branch
          %239 = sbr.rel (%p237) target = $region16
        $region15: #{tpu_custom_call.1} parent=11 // pred_region
          %s241 = ssub.s32 256, 256
          %242 = vsyncadd [#allocation7], %s241
          %s243 = sshll.u32 [#allocation6], 4
          %s244 = int_to_ptr.vmem [resolvable:$true] %s243
          %249 = dma.hbm_to_vmem [thread:$0]  %s1, 256, %s244, [#allocation7], 64, 64, 4
        $region16: #{tpu_custom_call.1} parent=11 // pred_fallthru
          _
        // Predicated region
        $region17: #{tpu_custom_call.1} parent=11 // pred_check
          %p250 = pneg %p100
        $region18: #{tpu_custom_call.1} parent=11 // pred_check_branch
          %252 = sbr.rel (%p250) target = $region20
        $region19: #{tpu_custom_call.1} parent=11 // pred_region
          _
        $region20: #{tpu_custom_call.1} parent=11 // pred_fallthru
          _
        // Predicated region
        $region21: #{tpu_custom_call.1} parent=11 // pred_check
          %p253 = pneg %p121
        $region22: #{tpu_custom_call.1} parent=11 // pred_check_branch
          %255 = sbr.rel (%p253) target = $region24
        $region23: #{tpu_custom_call.1} parent=11 // pred_region
          _
        $region24: #{tpu_custom_call.1} parent=11 // pred_fallthru
          _
        // Predicated region
        $region25: #{tpu_custom_call.1} parent=11 // pred_check
          %p256 = pneg %p142
        $region26: #{tpu_custom_call.1} parent=11 // pred_check_branch
          %258 = sbr.rel (%p256) target = $region28
        $region27: #{tpu_custom_call.1} parent=11 // pred_region
          _
        $region28: #{tpu_custom_call.1} parent=11 // pred_fallthru
          _
      $region12: #{tpu_custom_call.1} parent=5 // pred_fallthru
        _
      %p259 = scmp.lt.s32.totalorder %s20, 4
      // Predicated region
      $region29: #{tpu_custom_call.1} parent=5 // pred_check
        %p260 = pneg %p259
      $region30: #{tpu_custom_call.1} parent=5 // pred_check_branch
        %262 = sbr.rel (%p260) target = $region32
      $region31: #{tpu_custom_call.1} parent=5 // pred_region
        // Predicated region
        $region33: #{tpu_custom_call.1} parent=31 // pred_check
          %p263 = pneg %p52
        $region34: #{tpu_custom_call.1} parent=31 // pred_check_branch
          %265 = sbr.rel (%p263) target = $region36
        $region35: #{tpu_custom_call.1} parent=31 // pred_region
          %s266 = sand.u32 %s20, 1
          %s267 = scalar_lea.sflag [#allocation4], %s266
          %s268 = sand.u32 %s42, 1
          %s269 = smul.addr %s268, 8
          %s270 = scalar_lea.vmem [#allocation3], %s269
          %s272 = ssub.s32 128, 128
          %273 = vsyncadd %s267, %s272
          %s274 = smul.addr %s27, 128
          %s275 = scalar_lea.hbm %s0, %s274
          %s277 = sshll.u32 %s270, 4
          %s278 = int_to_ptr.vmem [resolvable:$true] %s277
          %280 = dma.hbm_to_vmem [thread:$0]  %s275, 128, %s278, %s267
        $region36: #{tpu_custom_call.1} parent=31 // pred_fallthru
          _
        // Predicated region
        $region37: #{tpu_custom_call.1} parent=31 // pred_check
          %p281 = pneg %p162
        $region38: #{tpu_custom_call.1} parent=31 // pred_check_branch
          %283 = sbr.rel (%p281) target = $region40
        $region39: #{tpu_custom_call.1} parent=31 // pred_region
          %s284 = sand.u32 %s20, 1
          %s285 = scalar_lea.sflag [#allocation4], %s284
          %s286 = sand.u32 %s152, 1
          %s287 = smul.addr %s286, 16
          %s288 = scalar_lea.vmem [#allocation8], %s287
          %s290 = ssub.s32 256, 256
          %291 = vsyncadd %s285, %s290
          %s292 = smul.addr %s28, 64
          %s293 = scalar_lea.hbm %s5, %s292
          %s294 = sshll.u32 %s288, 4
          %s295 = int_to_ptr.vmem [resolvable:$true] %s294
          %300 = dma.hbm_to_vmem [thread:$0]  %s293, 256, %s295, %s285, 128, 64, 4
        $region40: #{tpu_custom_call.1} parent=31 // pred_fallthru
          _
        // Predicated region
        $region41: #{tpu_custom_call.1} parent=31 // pred_check
          %p301 = pneg %p188
        $region42: #{tpu_custom_call.1} parent=31 // pred_check_branch
          %303 = sbr.rel (%p301) target = $region44
        $region43: #{tpu_custom_call.1} parent=31 // pred_region
          %p304 = scmp.lt.s32.totalorder %s28, 1
          %s305 = scalar_select %p304, %s28, 1
          %s306 = scalar_lea.vmem %s6, %s305
        $region44: #{tpu_custom_call.1} parent=31 // pred_fallthru
          _
      $region32: #{tpu_custom_call.1} parent=5 // pred_fallthru
        _
      %p307 = scmp.le.s32.totalorder 1, %s20
      %p308 = scmp.lt.s32.totalorder %s20, 5
      %p309 = pnand %p307, %p308
      %p310 = pneg %p309
      // Predicated region
      $region45: #{tpu_custom_call.1} parent=5 // pred_check
        _
      $region46: #{tpu_custom_call.1} parent=5 // pred_check_branch
        %312 = sbr.rel (%p309) target = $region48
      $region47: #{tpu_custom_call.1} parent=5 // pred_region
        %s313 = ssub.s32 %s20, 1
        %s314 = sand.u32 %s25, 1
        %s315 = scalar_lea.sflag [#allocation4], %s314
        %s316 = sand.u32 %s45, 1
        %s317 = smul.addr %s316, 8
        %s318 = scalar_lea.vmem [#allocation3], %s317
        // Predicated region
        $region49: #{tpu_custom_call.1} parent=47 // pred_check
          %p319 = pneg %p58
        $region50: #{tpu_custom_call.1} parent=47 // pred_check_branch
          %321 = sbr.rel (%p319) target = $region52
        $region51: #{tpu_custom_call.1} parent=47 // pred_region
          %322 = dma.done %s315, 128
        $region52: #{tpu_custom_call.1} parent=47 // pred_fallthru
          _
        // Predicated region
        $region53: #{tpu_custom_call.1} parent=47 // pred_check
          %p323 = pneg %p79
        $region54: #{tpu_custom_call.1} parent=47 // pred_check_branch
          %325 = sbr.rel (%p323) target = $region56
        $region55: #{tpu_custom_call.1} parent=47 // pred_region
          %326 = dma.done [#allocation7], 256
        $region56: #{tpu_custom_call.1} parent=47 // pred_fallthru
          _
        %s327 = sand.u32 %s25, 1
        %s328 = scalar_lea.sflag [#allocation4], %s327
        %s329 = sand.u32 %s155, 1
        %s330 = smul.addr %s329, 16
        %s331 = scalar_lea.vmem [#allocation8], %s330
        // Predicated region
        $region57: #{tpu_custom_call.1} parent=47 // pred_check
          %p332 = pneg %p168
        $region58: #{tpu_custom_call.1} parent=47 // pred_check_branch
          %334 = sbr.rel (%p332) target = $region60
        $region59: #{tpu_custom_call.1} parent=47 // pred_region
          %335 = dma.done %s328, 256
        $region60: #{tpu_custom_call.1} parent=47 // pred_fallthru
          _
        %s336 = sand.u32 %s25, 1
        %s337 = scalar_lea.sflag [#allocation4], %s336
        %s338 = sand.u32 %s45, 1
        %s339 = smul.addr %s338, 8
        %s340 = scalar_lea.vmem [#allocation3], %s339
        %p341 = pneg %p58
        %p342 = pneg %p55
        %p343 = pneg %p79
        %p344 = pneg %p76
        %p345 = pneg %p100
        %p346 = pneg %p97
        %p347 = pneg %p121
        %p348 = pneg %p118
        %p349 = pneg %p142
        %p350 = pneg %p139
        %s351 = sand.u32 %s25, 1
        %s352 = scalar_lea.sflag [#allocation4], %s351
        %s353 = sand.u32 %s155, 1
        %s354 = smul.addr %s353, 16
        %s355 = scalar_lea.vmem [#allocation8], %s354
        %p356 = pneg %p168
        %p357 = pneg %p165
        %p358 = scmp.lt.s32.totalorder %s30, 1
        %s359 = scalar_select %p358, %s30, 1
        %s360 = scalar_lea.vmem %s6, %s359
        %p361 = pneg %p194
        %p362 = pneg %p191
        %p363 = pneg %p222
        %p364 = pneg %p219
        %s365 = sand.u32 %s209, 1
        %s366 = scalar_lea.sflag [#allocation5], %s365
        %s367 = sand.u32 %s209, 1
        %s368 = smul.addr %s367, 8
        %s369 = scalar_lea.vmem [#allocation9], %s368
        %p370 = scmp.lt.s32.totalorder %s30, 1
        %s371 = scalar_select %p370, %s30, 1
        %s372 = scalar_lea.vmem %s6, %s371
        %p374 = scmp.eq.s32.totalorder %s30, 0
        // Predicated region
        $region61: #{tpu_custom_call.1} parent=47 // pred_check
          %p375 = pneg %p374
        $region62: #{tpu_custom_call.1} parent=47 // pred_check_branch
          %377 = sbr.rel (%p375) target = $region64
        $region63: #{tpu_custom_call.1} parent=47 // pred_region
          %v378 = vld [vmem:[%s318] sm:$0xff]
          %v379 = vpack.c.bf16 %v378, %v378
          %v380 = vld [vmem:[#allocation6] sm:$0xf]
          %v381 = vld [vmem:[#allocation6 + $0x4] sm:$0xf]
          %v382 = vld [vmem:[#allocation6 + $0x8] sm:$0xf]
          %v383 = vld [vmem:[#allocation6 + $0xc] sm:$0xf]
          %v384 = vld [vmem:[%s2] sm:$0x1]
          %v386 = vlaneseq
          %v387 = vshrl.u32 %v386, 7
          %v388 = vsub.s32 0, %v387
          %v389 = vrot.slane %v384, %v388
          %v395 = vunpack.c.l.b16 %v380
          %v396 = vunpack.c.l.b16 %v381
          %v397 = vunpack.c.l.b16 %v382
          %v398 = vunpack.c.l.b16 %v383
          %v399 = vpack.c.b16 %v396, %v395
          %v400 = vpack.c.b16 %v398, %v397
          %vm403 = vcmask 261120
          %v405 = vsel %vm403, %v379, 0
          %407 = vmatprep.subr.bf16.mxu0 0
          %408 = vmatpush1.bf16.msra.mxu0 %v399
          %409 = vmatprep.subr.bf16.mxu0 0
          %410 = vmatpush1.bf16.msra.mxu0 %v400
          %411 = vmatprep.subr.bf16.mxu0 0
          %412 = vmatpush1.bf16.msra.mxu0 0
          %413 = vmatprep.subr.bf16.mxu0 0
          %414 = vmatpush1.bf16.msra.mxu0 0
          %415 = vmatprep.subr.bf16.mxu0 0
          %416 = vmatpush1.bf16.msra.mxu0 0
          %417 = vmatprep.subr.bf16.mxu0 0
          %418 = vmatpush1.bf16.msra.mxu0 0
          %419 = vmatprep.subr.bf16.mxu0 0
          %420 = vmatpush1.bf16.msra.mxu0 0
          %421 = vmatprep.subr.bf16.mxu0 0
          %422 = vmatpush1.bf16.msra.mxu0 0
          %423 = vmatprep.subr.bf16.mxu0 0
          %424 = vmatpush1.bf16.msra.mxu0 0
          %425 = vmatprep.subr.bf16.mxu0 0
          %426 = vmatpush1.bf16.msra.mxu0 0
          %427 = vmatprep.subr.bf16.mxu0 0
          %428 = vmatpush1.bf16.msra.mxu0 0
          %429 = vmatprep.subr.bf16.mxu0 0
          %430 = vmatpush1.bf16.msra.mxu0 0
          %431 = vmatprep.subr.bf16.mxu0 0
          %432 = vmatpush1.bf16.msra.mxu0 0
          %433 = vmatprep.subr.bf16.mxu0 0
          %434 = vmatpush1.bf16.msra.mxu0 0
          %435 = vmatprep.subr.bf16.mxu0 0
          %436 = vmatpush1.bf16.msra.mxu0 0
          %437 = vmatprep.subr.bf16.mxu0 0
          %438 = vmatpush1.bf16.msra.mxu0 0
          %439 = vmatprep.mubr.bf16.mxu0 0
          %440 = vmatmul.mubr.bf16.gmra.mrb[0].mxu0 %v405
          %v441 = vpop.f32.mrb[0].mxu0
          %v442 = vadd.f32 %v389, %v441
          %v443 = vpop.f32.mrb[0].mxu0
          %v444 = vpop.f32.mrb[0].mxu0
          %v445 = vpop.f32.mrb[0].mxu0
          %446 = vdwg.mxu0
          %v447 = vmul.f32 %v442, 0.5
          %v448 = vmul.f32 %v442, 0.70710677
          %v449 = verf.f32.pop %v448
          %v450 = vadd.f32 %v449, 1.0
          %v451 = vmul.f32 %v447, %v450
          %v452 = vsel %vm403, %v451, 0.0
          %453 = vadd.xlane.f32.xlu0 %v452
          %v454 = vpop.xlane.xlu0 %453
          %v455 = vrcp.pop 32.0
          %v456 = vmul.f32 %v454, %v455
          %v457 = vsub.f32 %v451, %v456
          %v458 = vmul.f32 %v457, %v457
          %v459 = vsel %vm403, %v458, 0.0
          %460 = vadd.xlane.f32.xlu0 %v459
          %v461 = vpop.xlane.xlu0 %460
          %v462 = vmul.f32 %v461, %v455
          %v463 = vadd.f32 %v462, 1e-05
          %v464 = vrsqrt.pop %v463
          %v465 = vmul.f32 %v457, %v464
          %v466 = vld [vmem:[%s3] sm:$0x1]
          %v468 = vlaneseq
          %v469 = vshrl.u32 %v468, 7
          %v470 = vsub.s32 0, %v469
          %v471 = vrot.slane %v466, %v470
          %v473 = vmul.f32 %v465, %v471
          %v474 = vld [vmem:[%s4] sm:$0x1]
          %v476 = vlaneseq
          %v477 = vshrl.u32 %v476, 7
          %v478 = vsub.s32 0, %v477
          %v479 = vrot.slane %v474, %v478
          %v481 = vadd.f32 %v473, %v479
          %v482 = vpack.c.bf16 %v481, %v481
          %vm483 = vcmask 257024
          %484 = vst.msk [vmem:[#allocation2] sm:$0xf] %vm483, %v482
        $region64: #{tpu_custom_call.1} parent=47 // pred_fallthru
          _
        %v485 = vld [vmem:[#allocation2] sm:$0xf]
        %v486 = vld [vmem:[%s331] sm:$0xf]
        %v487 = vld [vmem:[%s331 + $0x4] sm:$0xf]
        %v488 = vld [vmem:[%s331 + $0x8] sm:$0xf]
        %v489 = vld [vmem:[%s331 + $0xc] sm:$0xf]
        %v490 = vld [vmem:[%s372] sm:$0x1]
        %v492 = vlaneseq
        %v493 = vshrl.u32 %v492, 7
        %v494 = vsub.s32 0, %v493
        %v495 = vrot.slane %v490, %v494
        %v501 = vunpack.c.l.b16 %v486
        %v502 = vunpack.c.l.b16 %v487
        %v503 = vunpack.c.l.b16 %v488
        %v504 = vunpack.c.l.b16 %v489
        %v505 = vpack.c.b16 %v502, %v501
        %v506 = vpack.c.b16 %v504, %v503
        %vm509 = vcmask 261120
        %v511 = vsel %vm509, %v485, 0
        %513 = vmatprep.subr.bf16.mxu0 0
        %514 = vmatpush1.bf16.msra.mxu0 %v505
        %515 = vmatprep.subr.bf16.mxu0 0
        %516 = vmatpush1.bf16.msra.mxu0 %v506
        %517 = vmatprep.subr.bf16.mxu0 0
        %518 = vmatpush1.bf16.msra.mxu0 0
        %519 = vmatprep.subr.bf16.mxu0 0
        %520 = vmatpush1.bf16.msra.mxu0 0
        %521 = vmatprep.subr.bf16.mxu0 0
        %522 = vmatpush1.bf16.msra.mxu0 0
        %523 = vmatprep.subr.bf16.mxu0 0
        %524 = vmatpush1.bf16.msra.mxu0 0
        %525 = vmatprep.subr.bf16.mxu0 0
        %526 = vmatpush1.bf16.msra.mxu0 0
        %527 = vmatprep.subr.bf16.mxu0 0
        %528 = vmatpush1.bf16.msra.mxu0 0
        %529 = vmatprep.subr.bf16.mxu0 0
        %530 = vmatpush1.bf16.msra.mxu0 0
        %531 = vmatprep.subr.bf16.mxu0 0
        %532 = vmatpush1.bf16.msra.mxu0 0
        %533 = vmatprep.subr.bf16.mxu0 0
        %534 = vmatpush1.bf16.msra.mxu0 0
        %535 = vmatprep.subr.bf16.mxu0 0
        %536 = vmatpush1.bf16.msra.mxu0 0
        %537 = vmatprep.subr.bf16.mxu0 0
        %538 = vmatpush1.bf16.msra.mxu0 0
        %539 = vmatprep.subr.bf16.mxu0 0
        %540 = vmatpush1.bf16.msra.mxu0 0
        %541 = vmatprep.subr.bf16.mxu0 0
        %542 = vmatpush1.bf16.msra.mxu0 0
        %543 = vmatprep.subr.bf16.mxu0 0
        %544 = vmatpush1.bf16.msra.mxu0 0
        %545 = vmatprep.mubr.bf16.mxu0 0
        %546 = vmatmul.mubr.bf16.gmra.mrb[0].mxu0 %v511
        %v547 = vpop.f32.mrb[0].mxu0
        %v548 = vadd.f32 %v495, %v547
        %v549 = vpop.f32.mrb[0].mxu0
        %v550 = vpop.f32.mrb[0].mxu0
        %v551 = vpop.f32.mrb[0].mxu0
        %552 = vdwg.mxu0
        %553 = vst [vmem:[%s369] sm:$0xff] %v548
        %s554 = sand.u32 %s209, 1
        %s555 = scalar_lea.sflag [#allocation5], %s554
        %s556 = sand.u32 %s209, 1
        %s557 = smul.addr %s556, 8
        %s558 = scalar_lea.vmem [#allocation9], %s557
        // Predicated region
        $region65: #{tpu_custom_call.1} parent=47 // pred_check
          %p559 = pneg %p219
        $region66: #{tpu_custom_call.1} parent=47 // pred_check_branch
          %561 = sbr.rel (%p559) target = $region68
        $region67: #{tpu_custom_call.1} parent=47 // pred_region
          %s563 = ssub.s32 128, 128
          %564 = vsyncadd %s555, %s563
          %s565 = smul.addr %s29, 2
          %s566 = sadd.s32 %s30, %s565
          %s567 = smul.addr %s566, 128
          %s568 = scalar_lea.hbm %s7, %s567
          %s570 = sshll.u32 %s558, 4
          %s571 = int_to_ptr.vmem [resolvable:$true] %s570
          %573 = dma.vmem_to_hbm [thread:$0]  %s571, 128, %s568, %s555
        $region68: #{tpu_custom_call.1} parent=47 // pred_fallthru
          _
      $region48: #{tpu_custom_call.1} parent=5 // pred_fallthru
        _
      %p574 = scmp.le.s32.totalorder 2, %s20
      // Predicated region
      $region69: #{tpu_custom_call.1} parent=5 // pred_check
        %p575 = pneg %p574
      $region70: #{tpu_custom_call.1} parent=5 // pred_check_branch
        %577 = sbr.rel (%p575) target = $region72
      $region71: #{tpu_custom_call.1} parent=5 // pred_region
        %s578 = ssub.s32 %s20, 2
        // Predicated region
        $region73: #{tpu_custom_call.1} parent=71 // pred_check
          %p579 = pneg %p225
        $region74: #{tpu_custom_call.1} parent=71 // pred_check_branch
          %581 = sbr.rel (%p579) target = $region76
        $region75: #{tpu_custom_call.1} parent=71 // pred_region
          %s582 = sand.u32 %s210, 1
          %s583 = scalar_lea.sflag [#allocation5], %s582
          %s584 = sand.u32 %s210, 1
          %s585 = smul.addr %s584, 8
          %s586 = scalar_lea.vmem [#allocation9], %s585
          %587 = dma.done %s583, 128
        $region76: #{tpu_custom_call.1} parent=71 // pred_fallthru
          _
      $region72: #{tpu_custom_call.1} parent=5 // pred_fallthru
        _
    $region6: #{tpu_custom_call.1} parent=1 // loop_footer
      %s24 = sadd.s32 1, %s20
    $region7: #{tpu_custom_call.1} parent=1 // loop_footer_branch
      %19 = sbr.rel target = $region3
    $region8: #{tpu_custom_call.1} parent=1 // loop_exit
      _
    %588 = vsyncpa [#allocation4], 1
    %s589 = scalar_lea.sflag [#allocation4], 1
    %590 = vsyncpa %s589, 1
    %591 = vsyncpa [#allocation7], 1
    %592 = vsyncpa [#allocation5], 1
    %s593 = scalar_lea.sflag [#allocation5], 1
    %594 = vsyncpa %s593, 1

</llo_original>
